<compile_context>
chip_gen: v6e
topology: v6e:2x2x1
jax: 0.10.0
libtpu: 0.0.40
codegen_flags: <defaults>
</compile_context>

<pallas_src>
import functools
import math

import jax
import jax.numpy as jnp
from jax.experimental import pallas as pl
from jax.experimental.pallas import tpu as pltpu


def _round_up(a, b):
    return (a + b - 1) // b * b


def _gem_kernel(p_ref, x_ref, o_ref, *, eps, hw):
    # p_ref: SMEM (1,)        -- learnable GeM exponent
    # x_ref: VMEM (tile_rows, H*W)
    # o_ref: VMEM (tile_rows, 1)
    p = p_ref[0]
    inv_p = 1.0 / p                               # one scalar divide per tile
    x = x_ref[...].astype(jnp.float32)
    x = jnp.maximum(x, eps)                       # clamp(min=eps) -> x > 0
    # x ** p with a dynamic exponent: exp(p * log(x)); 2 EUP ops / element is
    # the floor for a runtime-valued p.
    xp = jnp.exp(p * jnp.log(x))
    s = jnp.sum(xp, axis=-1, keepdims=True)       # spatial sum (lane reduce)
    # mean ** (1/p) == exp((log(sum) - log(HW)) / p); log(HW) is a Python
    # constant, so the 1/(H*W) of avg_pool2d costs nothing per element.
    log_hw = math.log(hw)
    out = jnp.exp((jnp.log(s) - log_hw) * inv_p)
    o_ref[...] = out.astype(o_ref.dtype)


def gem_pool(x, p, eps=1e-6):
    """GeM pooling. x: (N, C, H, W), p: (1,) float. Returns (N, C, 1, 1)."""
    N, C, H, W = x.shape
    rows = N * C
    hw = H * W
    x2 = x.reshape(rows, hw)

    itemsize = jnp.dtype(x.dtype).itemsize
    # Sublane multiple: 8 for 32-bit, 16 for 16-bit, 32 for 8-bit dtypes.
    row_mult = max(8, 32 // itemsize)

    # Budget the row tile so a full-tile f32 intermediate (Mosaic materializes
    # the clamp/log/exp chain in f32) stays <= 4 MiB. Worst-case VMEM is then
    # roughly: 2 input buffers + a few live f32 intermediates + 2 lane-padded
    # output buffers  <~ 36 MiB, comfortably inside the 64 MiB limit on v7x.
    hw_pad = _round_up(hw, 128)                   # VMEM pads lanes to 128
    f32_tile_budget = 4 << 20
    budget_rows = max(row_mult, f32_tile_budget // (hw_pad * 4))
    tile_rows = min(8192, budget_rows, _round_up(rows, row_mult))
    tile_rows = max(row_mult, (tile_rows // row_mult) * row_mult)

    rows_pad = _round_up(rows, tile_rows)
    if rows_pad != rows:
        # Pad with 1.0 (a valid, >= eps value) so discarded rows stay finite.
        x2 = jnp.pad(x2, ((0, rows_pad - rows), (0, 0)), constant_values=1.0)
    num_tiles = rows_pad // tile_rows

    cost = pl.CostEstimate(
        flops=3 * rows_pad * hw + 2 * rows_pad,
        transcendentals=2 * rows_pad * hw + 2 * rows_pad,
        bytes_accessed=rows_pad * hw * itemsize + rows_pad * itemsize + 4,
    )

    out = pl.pallas_call(
        functools.partial(_gem_kernel, eps=eps, hw=hw),
        out_shape=jax.ShapeDtypeStruct((rows_pad, 1), x.dtype),
        grid=(num_tiles,),
        in_specs=[
            pl.BlockSpec(memory_space=pltpu.SMEM),             # p scalar
            pl.BlockSpec((tile_rows, hw), lambda i: (i, 0)),   # row tile
        ],
        out_specs=pl.BlockSpec((tile_rows, 1), lambda i: (i, 0)),
        compiler_params=pltpu.CompilerParams(
            dimension_semantics=("parallel",),                 # megacore on v7x
            vmem_limit_bytes=64 << 20,
        ),
        cost_estimate=cost,
    )(p, x2)

    return out[:rows].reshape(N, C, 1, 1)


def gem_ref(x, p, eps=1e-6):
    """Pure-JAX reference mirroring the PyTorch forward."""
    xp = jnp.maximum(x, eps) ** p[0]
    mean = jnp.mean(xp, axis=(-2, -1), keepdims=True)
    return mean ** (1.0 / p[0])


if __name__ == "__main__":
    key = jax.random.PRNGKey(0)
    N, C, H, W = 2, 4, 16, 16
    x = jax.random.uniform(key, (N, C, H, W), dtype=jnp.float32, minval=0.0, maxval=2.0)

    # Deterministic parameter init: p = 3.0 (as in GeM.__init__)
    p = jnp.ones((1,), dtype=jnp.float32) * 3.0
    eps = 1e-6

    out = gem_pool(x, p, eps)
    jax.block_until_ready(out)

    ref = gem_ref(x, p, eps)
    assert out.shape == (N, C, 1, 1), out.shape
    assert jnp.allclose(out, ref, rtol=1e-4, atol=1e-5), (
        f"max err {jnp.max(jnp.abs(out - ref))}"
    )
    print("KERNEL_OK")
</pallas_src>

<mosaic_0001>
module attributes {stable_mosaic.version = 11 : i64} {
  func.func @_gem_kernel(%arg0: i32, %arg1: memref<1xf32, #tpu.memory_space<smem>>, %arg2: memref<8x256xf32, #tpu.memory_space<vmem>>, %arg3: memref<8x1xf32, #tpu.memory_space<vmem>>) attributes {dimension_semantics = [#tpu.dimension_semantics<parallel>], iteration_bounds = array<i64: 1>, scalar_prefetch = 0 : i64, scratch_operands = 0 : i64, tpu.core_type = #tpu.core_type<tc>, window_params = [{transform_indices = @transform_0, window_bounds = array<i64: 1>}, {transform_indices = @transform_1, window_bounds = array<i64: 8, 256>}, {transform_indices = @transform_2, window_bounds = array<i64: 8, 1>}]} {
    %c0 = arith.constant 0 : index
    %0 = memref.load %arg1[%c0] : memref<1xf32, #tpu.memory_space<smem>>
    %cst = arith.constant 1.000000e+00 : f32
    %1 = arith.divf %cst, %0 : f32
    %c0_0 = arith.constant 0 : index
    %c0_1 = arith.constant 0 : index
    %2 = vector.load %arg2[%c0_0, %c0_1] : memref<8x256xf32, #tpu.memory_space<vmem>>, vector<8x256xf32>
    %cst_2 = arith.constant 9.99999997E-7 : f32
    %3 = vector.broadcast %cst_2 : f32 to vector<8x256xf32>
    %4 = arith.maximumf %2, %3 : vector<8x256xf32>
    %5 = math.log %4 : vector<8x256xf32>
    %6 = vector.broadcast %0 : f32 to vector<8x256xf32>
    %7 = arith.mulf %6, %5 : vector<8x256xf32>
    %8 = math.exp %7 : vector<8x256xf32>
    %cst_3 = arith.constant dense<0.000000e+00> : vector<8xf32>
    %9 = vector.multi_reduction <add>, %8, %cst_3 [1] : vector<8x256xf32> to vector<8xf32>
    %10 = vector.shape_cast %9 : vector<8xf32> to vector<8x1xf32>
    %11 = math.log %10 : vector<8x1xf32>
    %cst_4 = arith.constant 5.54517746 : f32
    %12 = vector.broadcast %cst_4 : f32 to vector<8x1xf32>
    %13 = arith.subf %11, %12 : vector<8x1xf32>
    %14 = vector.broadcast %1 : f32 to vector<8x1xf32>
    %15 = arith.mulf %13, %14 : vector<8x1xf32>
    %16 = math.exp %15 : vector<8x1xf32>
    %c0_5 = arith.constant 0 : index
    %c0_6 = arith.constant 0 : index
    %17 = vector.load %arg3[%c0_5, %c0_6] : memref<8x1xf32, #tpu.memory_space<vmem>>, vector<8x1xf32>
    tpu.vector_store %arg3[%c0_5, %c0_6], %16 {strides = array<i32>} : memref<8x1xf32, #tpu.memory_space<vmem>>, vector<8x1xf32>,
    return
  }
  func.func @transform_0(%arg0: i32) -> i32 {
    %c0_i32 = arith.constant 0 : i32
    %c0_i32_0 = arith.constant 0 : i32
    return %c0_i32 : i32
  }
  func.func @transform_1(%arg0: i32) -> (i32, i32) {
    %c0_i32 = arith.constant 0 : i32
    %c0_i32_0 = arith.constant 0 : i32
    return %arg0, %c0_i32 : i32, i32
  }
  func.func @transform_2(%arg0: i32) -> (i32, i32) {
    %c0_i32 = arith.constant 0 : i32
    %c0_i32_0 = arith.constant 0 : i32
    return %arg0, %c0_i32 : i32, i32
  }
}

</mosaic_0001>

<llo_original>
// kernel: tpu_custom_call.1
$region0: #{tpu_custom_call.1}
  #allocation0 [shape = 'u32[]', space=smem, size = 0x4, offset = 0x4, fixed_abs, tag = 'smem constant byte address 0x4 - core index']
  #allocation1 [shape = 'u32[144,128]{1,0:T(1,128)}', space=vmem, size = 0x12000, scoped, tag = 'internal scratch']
  #allocation2 [shape = 'f32[1]{0:T(128)S(6)}', space=smem, size = 0x200, scoped, tag = 'scoped memory for tpu_custom_call.1']
  %s0 = inlined_call_operand.<no memory space> [shape: f32[1], index: 0, kind: input, shape index: {}]
  %s1 = inlined_call_operand.hbm [shape: f32[8,256], index: 1, kind: input, shape index: {}]
  %s2 = inlined_call_operand.vmem [shape: f32[8,1], index: 2, kind: output, shape index: {}]
  %s3 = sld [smem:[#allocation0]]
  $region22: #{tpu_custom_call.1} parent=0
    _
  %s5 = ssub.s32 1, %s3
  %s6 = scalar_select 0, %s5, %s3
  %7 = sst [smem:[#allocation2]] %s0
  $region1: #{tpu_custom_call.1} parent=0
    #allocation3 [shape = 'u8[8192]{0}', space=vmem, size = 0x2000, scoped, tag = 'input window, operand 1, single buffered']
    #allocation4 [shape = 's32[1]{0}', space=sflag, size = 0x4, scoped, tag = 'scoped memory for tpu_custom_call.1']
    %8 = vsyncpa [#allocation4], 0
    // Predicated region
    $region2: #{tpu_custom_call.1} parent=1 // pred_check
      _
    $region3: #{tpu_custom_call.1} parent=1 // pred_check_branch
      %10 = sbr.rel (0) target = $region5
    $region4: #{tpu_custom_call.1} parent=1 // pred_region
      _
    $region5: #{tpu_custom_call.1} parent=1 // pred_fallthru
      _
    // Predicated region
    $region6: #{tpu_custom_call.1} parent=1 // pred_check
      _
    $region7: #{tpu_custom_call.1} parent=1 // pred_check_branch
      %12 = sbr.rel (0) target = $region9
    $region8: #{tpu_custom_call.1} parent=1 // pred_region
      %s14 = ssub.s32 256, 256
      %15 = vsyncadd [#allocation4], %s14
      %s17 = sshll.u32 [#allocation3], 4
      %s18 = int_to_ptr.vmem [resolvable:$true] %s17
      %20 = dma.hbm_to_vmem [thread:$0]  %s1, 256, %s18, [#allocation4]
    $region9: #{tpu_custom_call.1} parent=1 // pred_fallthru
      _
    // Predicated region
    $region10: #{tpu_custom_call.1} parent=1 // pred_check
      _
    $region11: #{tpu_custom_call.1} parent=1 // pred_check_branch
      %22 = sbr.rel (0) target = $region13
    $region12: #{tpu_custom_call.1} parent=1 // pred_region
      %23 = dma.done [#allocation4], 256
    $region13: #{tpu_custom_call.1} parent=1 // pred_fallthru
      _
    %s24 = sld [smem:[#allocation2]]
    %v25 = vstv %s24
    %v26 = vrcp.pop %v25
    %s27 = vtos %v26
    %v28 = vld [vmem:[#allocation3] sm:$0xff]
    %v29 = vld [vmem:[#allocation3 + $0x8] sm:$0xff]
    %v30 = vmax.f32 %v28, 1e-06
    %v31 = vmax.f32 %v29, 1e-06
    %v32 = vlog2.pop %v30
    %v33 = vmul.f32 %v32, 0.6931472
    %v34 = vlog2.pop %v31
    %v35 = vmul.f32 %v34, 0.6931472
    %v36 = vstv %s24
    %v37 = vmul.f32 %v36, %v33
    %v38 = vmul.f32 %v36, %v35
    %v39 = vmul.f32 %v37, 1.442695
    %v40 = vpow.pop %v39
    %v41 = vmul.f32 %v38, 1.442695
    %v42 = vpow.pop %v41
    %v43 = vadd.f32 %v40, %v42
    %44 = vadd.xlane.f32.xlu0 %v43
    %v45 = vpop.xlane.xlu0 %44
    %v46 = vlog2.pop %v45
    %v47 = vmul.f32 %v46, 0.6931472
    %v48 = vsub.f32 %v47, 5.5451775
    %v49 = vstv %s27
    %v50 = vmul.f32 %v48, %v49
    %v51 = vmul.f32 %v50, 1.442695
    %v52 = vpow.pop %v51
    %vm53 = vcmask 7168
    %54 = vst.msk [vmem:[%s2] sm:$0xff] %vm53, %v52
    // Predicated region
    $region14: #{tpu_custom_call.1} parent=1 // pred_check
      _
    $region15: #{tpu_custom_call.1} parent=1 // pred_check_branch
      %56 = sbr.rel (0) target = $region17
    $region16: #{tpu_custom_call.1} parent=1 // pred_region
      _
    $region17: #{tpu_custom_call.1} parent=1 // pred_fallthru
      _
    // Predicated region
    $region18: #{tpu_custom_call.1} parent=1 // pred_check
      _
    $region19: #{tpu_custom_call.1} parent=1 // pred_check_branch
      %58 = sbr.rel (0) target = $region21
    $region20: #{tpu_custom_call.1} parent=1 // pred_region
      _
    $region21: #{tpu_custom_call.1} parent=1 // pred_fallthru
      _
    %59 = vsyncpa [#allocation4], 1

</llo_original>
